<compile_context>
chip_gen: v7x
topology: tpu7x:2x2x1
jax: 0.10.0
libtpu: 0.0.40
codegen_flags: <defaults>
</compile_context>

<pallas_src>
import functools

import jax
import jax.numpy as jnp
from jax import lax
from jax.experimental import pallas as pl
from jax.experimental.pallas import tpu as pltpu


def _patch_expand_kernel(x_ref, w_ref, b_ref, g_ref, beta_ref, o_ref, *,
                         eps, r, w_cols, c, compute_dtype):
    # x_ref:    (r*W, C_in)       token rows for `r` whole image rows of one batch
    # w_ref:    (C_in, 4c)        projection weight (MXU dtype)
    # b/g/beta: (1, 4c)           f32 bias / LN gamma / LN beta
    # o_ref:    (1, r, 2, W, 2c)  (batch, image-row, p1, image-col, (p2 c))
    x = x_ref[...]
    if x.dtype != compute_dtype:
        x = x.astype(compute_dtype)          # cast under MXU latency; saves an HBM pass
    y = jnp.dot(x, w_ref[...], preferred_element_type=jnp.float32)
    y = y + b_ref[...]

    # LayerNorm over the projected channel dim (4c), statistics in f32.
    mean = jnp.mean(y, axis=-1, keepdims=True)
    centered = y - mean
    var = jnp.mean(centered * centered, axis=-1, keepdims=True)
    y = centered * lax.rsqrt(var + eps)
    y = (y * g_ref[...] + beta_ref[...]).astype(o_ref.dtype)

    two_c = 2 * c
    # Fused pixel shuffle: the p1 channel chunk (size 2c, ordered (p2, c)) selects the
    # output image-row parity.  Two whole-tile stores; the reshape only splits the
    # leading (sublane) dim, so there is no lane relayout.
    o_ref[0, :, 0, :, :] = y[:, :two_c].reshape(r, w_cols, two_c)
    o_ref[0, :, 1, :, :] = y[:, two_c:].reshape(r, w_cols, two_c)


def _build_call(B, H, W, r, C_in, D4, c, out_dtype, eps, compute_dtype,
                vmem_limit, cost):
    tm = r * W
    hb_per_b = H // r
    kernel = functools.partial(_patch_expand_kernel, eps=eps, r=r, w_cols=W, c=c,
                               compute_dtype=compute_dtype)
    return pl.pallas_call(
        kernel,
        out_shape=jax.ShapeDtypeStruct((B, H, 2, W, 2 * c), out_dtype),
        grid_spec=pltpu.PrefetchScalarGridSpec(
            num_scalar_prefetch=0,
            grid=(B, hb_per_b),
            in_specs=[
                pl.BlockSpec((tm, C_in), lambda b, hb: (b * hb_per_b + hb, 0)),
                pl.BlockSpec((C_in, D4), lambda b, hb: (0, 0)),
                pl.BlockSpec((1, D4), lambda b, hb: (0, 0)),
                pl.BlockSpec((1, D4), lambda b, hb: (0, 0)),
                pl.BlockSpec((1, D4), lambda b, hb: (0, 0)),
            ],
            out_specs=pl.BlockSpec((1, r, 2, W, 2 * c),
                                   lambda b, hb: (b, hb, 0, 0, 0)),
        ),
        compiler_params=pltpu.CompilerParams(
            dimension_semantics=("parallel", "parallel"),
            vmem_limit_bytes=vmem_limit,
        ),
        cost_estimate=cost,
    )


def _pick_r(B, H, W, target_tm, vmem_est, vmem_budget):
    """Pick image rows per grid step: legal, multi-step grid, MXU-aligned, VMEM-fitting."""
    divisors = [rr for rr in range(1, H + 1) if H % rr == 0]
    legal = [rr for rr in divisors if (rr * W) % 8 == 0]
    if not legal:
        raise ValueError(
            "patch_expand_pallas requires some divisor r of H with (r*W) % 8 == 0 "
            f"(got H={H}, W={W}).")
    # Keep >= 2 grid steps so v7x's second TensorCore gets work (and DMA overlaps compute).
    multi = [rr for rr in legal if B * (H // rr) >= 2]
    cand = multi if multi else legal
    fitting = [rr for rr in cand
               if rr * W <= target_tm and vmem_est(rr) <= vmem_budget]
    pool = fitting if fitting else [min(cand)]

    def align_rank(rr):
        tm = rr * W
        if tm % 256 == 0:
            return 2
        if tm % 128 == 0:
            return 1
        return 0

    best = max(align_rank(rr) for rr in pool)
    pool = [rr for rr in pool if align_rank(rr) == best]
    return max(pool)


def patch_expand_pallas(x, H, W, weight, bias, gamma, beta, out_dim, *,
                        eps=1e-5, mxu_dtype=jnp.bfloat16, out_dtype=None,
                        target_tm=None):
    """x: (B, N, C_in) with N == H*W. Returns (B, 2H, 2W, out_dim)."""
    B, N, C_in = x.shape
    assert N == H * W
    c = out_dim
    D4 = 4 * out_dim
    assert weight.shape == (C_in, D4)

    compute_dtype = jnp.dtype(x.dtype) if mxu_dtype is None else jnp.dtype(mxu_dtype)
    out_dtype = jnp.dtype(x.dtype) if out_dtype is None else jnp.dtype(out_dtype)
    x_bytes = jnp.dtype(x.dtype).itemsize
    cd_bytes = jnp.dtype(compute_dtype).itemsize
    out_bytes = jnp.dtype(out_dtype).itemsize

    # x is passed through in its native dtype (cast happens inside the kernel).
    x_flat = x.reshape(B * N, C_in)
    w = weight.astype(compute_dtype)
    b2 = bias.reshape(1, D4).astype(jnp.float32)
    g2 = gamma.reshape(1, D4).astype(jnp.float32)
    be2 = beta.reshape(1, D4).astype(jnp.float32)

    # ---- generation-aware VMEM sizing --------------------------------------------
    try:
        vmem_cap = int(getattr(pltpu.get_tpu_info(), "vmem_capacity_bytes", 0) or 0)
    except Exception:  # narrow: hardware query only; kernel compile errors still surface
        vmem_cap = 0
    if vmem_cap <= 0:
        vmem_cap = 64 * 1024 * 1024            # conservative (v7x-sized) fallback
    if vmem_cap >= 128 * 1024 * 1024:          # v5e / v6e: 128 MiB physical
        vmem_limit = 96 * 1024 * 1024
        vmem_budget = 72 * 1024 * 1024
        default_tm = 1024
    else:                                      # v7x: 64 MiB physical
        vmem_limit = 40 * 1024 * 1024
        vmem_budget = 26 * 1024 * 1024
        default_tm = 512
    if target_tm is None:
        target_tm = default_tm

    def vmem_est(rr):
        tm = rr * W
        cast_tmp = tm * C_in * cd_bytes if compute_dtype != x.dtype else 0
        return (2 * tm * C_in * x_bytes        # double-buffered input tile
                + cast_tmp                     # in-kernel cast copy of the tile
                + 2 * tm * D4 * out_bytes      # double-buffered output tile
                + 2 * tm * D4 * 4              # f32 LN intermediates (y, centered)
                + 2 * C_in * D4 * cd_bytes     # weight (2 pipeline buffers)
                + 8 * D4 * 4)                  # bias / gamma / beta

    r = _pick_r(B, H, W, target_tm, vmem_est, vmem_budget)

    cost = pl.CostEstimate(
        flops=2 * B * N * C_in * D4,
        transcendentals=B * N,
        bytes_accessed=(B * N * C_in * x_bytes + C_in * D4 * cd_bytes
                        + 3 * D4 * 4 + B * N * D4 * out_bytes),
    )

    out5 = _build_call(B, H, W, r, C_in, D4, c, out_dtype, eps, compute_dtype,
                       vmem_limit, cost)(x_flat, w, b2, g2, be2)

    # (B, H, 2, W, 2c) -> (B, 2H, 2W, c): adjacent-dim merges only -> metadata reshape.
    return out5.reshape(B, 2 * H, 2 * W, c)


def _reference(x, H, W, weight, bias, gamma, beta, out_dim, eps=1e-5):
    B, N, C = x.shape
    y = x.astype(jnp.float32) @ weight.astype(jnp.float32) + bias
    mean = jnp.mean(y, axis=-1, keepdims=True)
    var = jnp.mean((y - mean) ** 2, axis=-1, keepdims=True)
    y = (y - mean) / jnp.sqrt(var + eps) * gamma + beta
    y = y.reshape(B, H, W, 2, 2, out_dim)
    y = jnp.transpose(y, (0, 1, 3, 2, 4, 5)).reshape(B, 2 * H, 2 * W, out_dim)
    return y.astype(x.dtype)


if __name__ == "__main__":
    # Small shapes: B=2, H=W=4 -> N=16 tokens, in_dim=32, out_dim=8 (proj -> 32 channels).
    B, H, W = 2, 4, 4
    in_dim, out_dim = 32, 8
    N = H * W
    D4 = 4 * out_dim

    key = jax.random.PRNGKey(0)
    kx, kw, kb = jax.random.split(key, 3)

    x = jax.random.normal(kx, (B, N, in_dim), dtype=jnp.float32)

    # Deterministic synthetic parameters.  Linear weight stored as (in_dim, 4*out_dim)
    # so the kernel computes x @ W + b (== PyTorch x @ weight.T + bias).
    weight = jax.random.normal(kw, (in_dim, D4), dtype=jnp.float32) * 0.02
    bias = jax.random.normal(kb, (D4,), dtype=jnp.float32) * 0.01
    gamma = jnp.ones((D4,), dtype=jnp.float32)   # LayerNorm default weight
    beta = jnp.zeros((D4,), dtype=jnp.float32)   # LayerNorm default bias

    ref = _reference(x, H, W, weight, bias, gamma, beta, out_dim)

    # f32 MXU path: tight tolerance vs reference.
    out_f32 = patch_expand_pallas(x, H, W, weight, bias, gamma, beta, out_dim,
                                  mxu_dtype=jnp.float32)
    out_f32 = jax.block_until_ready(out_f32)
    assert out_f32.shape == (B, 2 * H, 2 * W, out_dim), out_f32.shape
    assert jnp.allclose(out_f32, ref, atol=1e-4, rtol=1e-4), "f32 path mismatch"

    # Default path: bf16 MXU operands (cast inside kernel), f32 accumulation + f32 LN.
    out_bf = patch_expand_pallas(x, H, W, weight, bias, gamma, beta, out_dim)
    out_bf = jax.block_until_ready(out_bf)
    assert out_bf.shape == (B, 2 * H, 2 * W, out_dim), out_bf.shape
    assert jnp.allclose(out_bf, ref, atol=3e-2, rtol=3e-2), "bf16 path mismatch"

    print("KERNEL_OK")
</pallas_src>

<mosaic_0001>
module attributes {stable_mosaic.version = 11 : i64} {
  func.func @_patch_expand_kernel(%arg0: i32, %arg1: i32, %arg2: memref<16x32xf32, #tpu.memory_space<vmem>>, %arg3: memref<32x32xf32, #tpu.memory_space<vmem>>, %arg4: memref<1x32xf32, #tpu.memory_space<vmem>>, %arg5: memref<1x32xf32, #tpu.memory_space<vmem>>, %arg6: memref<1x32xf32, #tpu.memory_space<vmem>>, %arg7: memref<1x4x2x4x16xf32, #tpu.memory_space<vmem>>) attributes {dimension_semantics = [#tpu.dimension_semantics<parallel>, #tpu.dimension_semantics<parallel>], iteration_bounds = array<i64: 2, 1>, scalar_prefetch = 0 : i64, scratch_operands = 0 : i64, tpu.core_type = #tpu.core_type<tc>, window_params = [{transform_indices = @transform_0, window_bounds = array<i64: 16, 32>}, {pipeline_mode = #tpu.pipeline_mode<synchronous>, transform_indices = @transform_1, window_bounds = array<i64: 32, 32>}, {pipeline_mode = #tpu.pipeline_mode<synchronous>, transform_indices = @transform_2, window_bounds = array<i64: 1, 32>}, {pipeline_mode = #tpu.pipeline_mode<synchronous>, transform_indices = @transform_3, window_bounds = array<i64: 1, 32>}, {pipeline_mode = #tpu.pipeline_mode<synchronous>, transform_indices = @transform_4, window_bounds = array<i64: 1, 32>}, {transform_indices = @transform_5, window_bounds = array<i64: 1, 4, 2, 4, 16>}]} {
    %c0 = arith.constant 0 : index
    %c0_0 = arith.constant 0 : index
    %0 = vector.load %arg2[%c0, %c0_0] : memref<16x32xf32, #tpu.memory_space<vmem>>, vector<16x32xf32>
    %c0_1 = arith.constant 0 : index
    %c0_2 = arith.constant 0 : index
    %1 = vector.load %arg3[%c0_1, %c0_2] : memref<32x32xf32, #tpu.memory_space<vmem>>, vector<32x32xf32>
    %cst = arith.constant dense<0.000000e+00> : vector<16x32xf32>
    %2 = tpu.matmul %0, %1, %cst {dimension_numbers = #tpu.dot_dimension_numbers<[1], [0], [0], [1], [0, 0, 1, 1], [], []>} : vector<16x32xf32>, vector<32x32xf32>, vector<16x32xf32> -> vector<16x32xf32>
    %c0_3 = arith.constant 0 : index
    %c0_4 = arith.constant 0 : index
    %3 = vector.load %arg4[%c0_3, %c0_4] : memref<1x32xf32, #tpu.memory_space<vmem>>, vector<1x32xf32>
    %4 = vector.broadcast %3 : vector<1x32xf32> to vector<16x32xf32>
    %5 = arith.addf %2, %4 : vector<16x32xf32>
    %cst_5 = arith.constant dense<0.000000e+00> : vector<16xf32>
    %6 = vector.multi_reduction <add>, %5, %cst_5 [1] : vector<16x32xf32> to vector<16xf32>
    %7 = vector.shape_cast %6 : vector<16xf32> to vector<16x1xf32>
    %cst_6 = arith.constant 3.200000e+01 : f32
    %8 = vector.broadcast %cst_6 : f32 to vector<16x1xf32>
    %9 = arith.divf %7, %8 : vector<16x1xf32>
    %10 = vector.broadcast %9 : vector<16x1xf32> to vector<16x32xf32>
    %11 = arith.subf %5, %10 : vector<16x32xf32>
    %12 = arith.mulf %11, %11 : vector<16x32xf32>
    %cst_7 = arith.constant dense<0.000000e+00> : vector<16xf32>
    %13 = vector.multi_reduction <add>, %12, %cst_7 [1] : vector<16x32xf32> to vector<16xf32>
    %14 = vector.shape_cast %13 : vector<16xf32> to vector<16x1xf32>
    %cst_8 = arith.constant 3.200000e+01 : f32
    %15 = vector.broadcast %cst_8 : f32 to vector<16x1xf32>
    %16 = arith.divf %14, %15 : vector<16x1xf32>
    %cst_9 = arith.constant 9.99999974E-6 : f32
    %17 = vector.broadcast %cst_9 : f32 to vector<16x1xf32>
    %18 = arith.addf %16, %17 : vector<16x1xf32>
    %19 = math.rsqrt %18 : vector<16x1xf32>
    %20 = vector.broadcast %19 : vector<16x1xf32> to vector<16x32xf32>
    %21 = arith.mulf %11, %20 : vector<16x32xf32>
    %c0_10 = arith.constant 0 : index
    %c0_11 = arith.constant 0 : index
    %22 = vector.load %arg5[%c0_10, %c0_11] : memref<1x32xf32, #tpu.memory_space<vmem>>, vector<1x32xf32>
    %23 = vector.broadcast %22 : vector<1x32xf32> to vector<16x32xf32>
    %24 = arith.mulf %21, %23 : vector<16x32xf32>
    %c0_12 = arith.constant 0 : index
    %c0_13 = arith.constant 0 : index
    %25 = vector.load %arg6[%c0_12, %c0_13] : memref<1x32xf32, #tpu.memory_space<vmem>>, vector<1x32xf32>
    %26 = vector.broadcast %25 : vector<1x32xf32> to vector<16x32xf32>
    %27 = arith.addf %24, %26 : vector<16x32xf32>
    %28 = vector.extract_strided_slice %27 {offsets = [0, 0], sizes = [16, 16], strides = [1, 1]} : vector<16x32xf32> to vector<16x16xf32>
    %29 = vector.shape_cast %28 : vector<16x16xf32> to vector<4x4x16xf32>
    %c0_14 = arith.constant 0 : index
    %c0_15 = arith.constant 0 : index
    %c0_16 = arith.constant 0 : index
    %c0_17 = arith.constant 0 : index
    %c0_18 = arith.constant 0 : index
    %30 = vector.load %arg7[%c0_14, %c0_15, %c0_16, %c0_17, %c0_18] : memref<1x4x2x4x16xf32, #tpu.memory_space<vmem>>, vector<1x4x1x4x16xf32>
    %31 = vector.shape_cast %30 : vector<1x4x1x4x16xf32> to vector<4x4x16xf32>
    %32 = vector.shape_cast %29 : vector<4x4x16xf32> to vector<1x4x1x4x16xf32>
    tpu.vector_store %arg7[%c0_14, %c0_15, %c0_16, %c0_17, %c0_18], %32 {strides = array<i32>} : memref<1x4x2x4x16xf32, #tpu.memory_space<vmem>>, vector<1x4x1x4x16xf32>,
    %33 = vector.extract_strided_slice %27 {offsets = [0, 16], sizes = [16, 16], strides = [1, 1]} : vector<16x32xf32> to vector<16x16xf32>
    %34 = vector.shape_cast %33 : vector<16x16xf32> to vector<4x4x16xf32>
    %c0_19 = arith.constant 0 : index
    %c0_20 = arith.constant 0 : index
    %c1 = arith.constant 1 : index
    %c0_21 = arith.constant 0 : index
    %c0_22 = arith.constant 0 : index
    %35 = vector.load %arg7[%c0_19, %c0_20, %c1, %c0_21, %c0_22] : memref<1x4x2x4x16xf32, #tpu.memory_space<vmem>>, vector<1x4x1x4x16xf32>
    %36 = vector.shape_cast %35 : vector<1x4x1x4x16xf32> to vector<4x4x16xf32>
    %37 = vector.shape_cast %34 : vector<4x4x16xf32> to vector<1x4x1x4x16xf32>
    tpu.vector_store %arg7[%c0_19, %c0_20, %c1, %c0_21, %c0_22], %37 {strides = array<i32>} : memref<1x4x2x4x16xf32, #tpu.memory_space<vmem>>, vector<1x4x1x4x16xf32>,
    return
  }
  func.func @transform_0(%arg0: i32, %arg1: i32) -> (i32, i32) {
    %c1_i32 = arith.constant 1 : i32
    %0 = arith.muli %arg0, %c1_i32 : i32
    %1 = arith.addi %0, %arg1 : i32
    %c0_i32 = arith.constant 0 : i32
    %c0_i32_0 = arith.constant 0 : i32
    return %1, %c0_i32 : i32, i32
  }
  func.func @transform_1(%arg0: i32, %arg1: i32) -> (i32, i32) {
    %c0_i32 = arith.constant 0 : i32
    %c0_i32_0 = arith.constant 0 : i32
    %c0_i32_1 = arith.constant 0 : i32
    return %c0_i32, %c0_i32_0 : i32, i32
  }
  func.func @transform_2(%arg0: i32, %arg1: i32) -> (i32, i32) {
    %c0_i32 = arith.constant 0 : i32
    %c0_i32_0 = arith.constant 0 : i32
    %c0_i32_1 = arith.constant 0 : i32
    return %c0_i32, %c0_i32_0 : i32, i32
  }
  func.func @transform_3(%arg0: i32, %arg1: i32) -> (i32, i32) {
    %c0_i32 = arith.constant 0 : i32
    %c0_i32_0 = arith.constant 0 : i32
    %c0_i32_1 = arith.constant 0 : i32
    return %c0_i32, %c0_i32_0 : i32, i32
  }
  func.func @transform_4(%arg0: i32, %arg1: i32) -> (i32, i32) {
    %c0_i32 = arith.constant 0 : i32
    %c0_i32_0 = arith.constant 0 : i32
    %c0_i32_1 = arith.constant 0 : i32
    return %c0_i32, %c0_i32_0 : i32, i32
  }
  func.func @transform_5(%arg0: i32, %arg1: i32) -> (i32, i32, i32, i32, i32) {
    %c0_i32 = arith.constant 0 : i32
    %c0_i32_0 = arith.constant 0 : i32
    %c0_i32_1 = arith.constant 0 : i32
    %c0_i32_2 = arith.constant 0 : i32
    return %arg0, %arg1, %c0_i32, %c0_i32_0, %c0_i32_1 : i32, i32, i32, i32, i32
  }
}

</mosaic_0001>

<llo_original>
// kernel: tpu_custom_call.1
$region0: #{tpu_custom_call.1}
  #allocation0 [shape = 'u32[]', space=smem, size = 0x4, offset = 0x4, fixed_abs, tag = 'smem constant byte address 0x4 - core index']
  #allocation1 [shape = 'u32[144,128]{1,0:T(1,128)}', space=vmem, size = 0x12000, scoped, tag = 'internal scratch']
  %s0 = inlined_call_operand.hbm [shape: f32[32,32], index: 0, kind: input, shape index: {}]
  %s1 = inlined_call_operand.hbm [shape: f32[32,32], index: 1, kind: input, shape index: {}]
  %s2 = inlined_call_operand.vmem [shape: f32[1,32], index: 2, kind: input, shape index: {}]
  %s3 = inlined_call_operand.vmem [shape: f32[1,32], index: 3, kind: input, shape index: {}]
  %s4 = inlined_call_operand.vmem [shape: f32[1,32], index: 4, kind: input, shape index: {}]
  %s5 = inlined_call_operand.hbm [shape: f32[2,4,2,4,16], index: 5, kind: output, shape index: {}]
  %s6 = sld [smem:[#allocation0]]
  $region61: #{tpu_custom_call.1} parent=0
    _
  %s8 = ssub.s32 1, %s6
  %s9 = scalar_select 0, %s8, %s6
  $region1: #{tpu_custom_call.1} parent=0
    #allocation2 [shape = 'u8[16384]{0}', space=vmem, size = 0x4000, scoped, tag = 'input window, operand 0']
    #allocation3 [shape = 's32[2]{0}', space=sflag, size = 0x8, scoped, tag = 'scoped memory for tpu_custom_call.1']
    #allocation4 [shape = 's32[2]{0}', space=sflag, size = 0x8, scoped, tag = 'scoped memory for tpu_custom_call.1']
    #allocation5 [shape = 'u8[16384]{0}', space=vmem, size = 0x4000, scoped, tag = 'input window, operand 1, single buffered']
    #allocation6 [shape = 's32[1]{0}', space=sflag, size = 0x4, scoped, tag = 'scoped memory for tpu_custom_call.1']
    #allocation7 [shape = 'u8[32768]{0}', space=vmem, size = 0x8000, scoped, tag = 'output window, operand 0']
    %10 = vsyncpa [#allocation3], 0
    %s11 = scalar_lea.sflag [#allocation3], 1
    %12 = vsyncpa %s11, 0
    %13 = vsyncpa [#allocation6], 0
    %14 = vsyncpa [#allocation4], 0
    %s15 = scalar_lea.sflag [#allocation4], 1
    %16 = vsyncpa %s15, 0
    loop: start=0, step=1, limit=4
    $region2: #{tpu_custom_call.1} parent=1 // loop_pre_header
      _
    $region3: #{tpu_custom_call.1} parent=1 // loop_header
      %s18 = sphi 0, %s22
      %p19 = scmp.ge.s32.totalorder %s18, 4
      %s25 = sphi 0, %s37
      %s26 = sphi 0, %s33
      %s27 = sphi 0, %s25
      %s28 = sphi 0, %s26
      %s29 = sphi 0, %s27
      %s30 = sphi 0, %s28
      %s42 = sphi 0, %s44
      %s45 = sphi 0, %s42
      %s46 = sphi 0, %s45
      %s62 = sphi 0, %s46
      %s66 = sphi 0, %s66
      %s68 = sphi 0, %s66
      %s69 = sphi 0, %s68
      %s83 = sphi 0, %s69
      %s87 = sphi 0, %s87
      %s89 = sphi 0, %s87
      %s90 = sphi 0, %s89
      %s104 = sphi 0, %s90
      %s108 = sphi 0, %s108
      %s110 = sphi 0, %s108
      %s111 = sphi 0, %s110
      %s125 = sphi 0, %s111
      %s129 = sphi 0, %s129
      %s131 = sphi 0, %s129
      %s132 = sphi 0, %s131
      %s146 = sphi 0, %s132
      %s154 = sphi 0, %s156
      %s157 = sphi 0, %s154
      %s158 = sphi 0, %s157
      %s174 = sphi 0, %s158
    $region4: #{tpu_custom_call.1} parent=1 // loop_header_branch
      %21 = sbr.rel (%p19) target = $region8
    $region5: #{tpu_custom_call.1} parent=1 // loop_body
      %s23 = ssub.s32 %s18, 1
      %s24 = ssub.s32 %s18, 2
      %s31 = sadd.s32 1, %s26
      %p32 = scmp.ge.s32.totalorder %s31, 1
      %s33 = scalar_select %p32, 0, %s31
      %s34 = sadd.s32 1, %s25
      %s35 = scalar_select %p32, %s34, %s25
      %p36 = scmp.ge.s32.totalorder %s35, 2
      %s37 = scalar_select %p36, 0, %s35
      %s38 = sadd.s32 %s25, %s26
      %s39 = sadd.s32 %s37, %s33
      %s40 = ssub.s32 %s38, %s39
      %p41 = scmp.eq.s32.totalorder %s40, 0
      %s43 = sadd.s32 %s42, 1
      %s44 = scalar_select %p41, %s42, %s43
      %p47 = pneg %p41
      %p48 = scmp.eq.s32.totalorder %s18, 1
      %p49 = por %p47, %p48
      %p50 = scmp.ne.s32.totalorder %s42, %s45
      %p51 = scmp.eq.s32.totalorder %s18, 0
      %p52 = por %p50, %p51
      %p53 = scmp.ne.s32.totalorder %s42, %s45
      %p54 = scmp.eq.s32.totalorder %s23, 1
      %p55 = por %p53, %p54
      %p56 = scmp.ne.s32.totalorder %s45, %s46
      %p57 = scmp.eq.s32.totalorder %s23, 0
      %p58 = por %p56, %p57
      %p59 = scmp.ne.s32.totalorder %s45, %s46
      %p60 = scmp.eq.s32.totalorder %s24, 1
      %p61 = por %p59, %p60
      %p63 = scmp.ne.s32.totalorder %s46, %s62
      %p64 = scmp.eq.s32.totalorder %s24, 0
      %p65 = por %p63, %p64
      %s67 = sadd.s32 %s66, 1
      %p70 = scmp.eq.s32.totalorder %s18, 1
      %p71 = scmp.ne.s32.totalorder %s66, %s68
      %p72 = scmp.eq.s32.totalorder %s18, 0
      %p73 = por %p71, %p72
      %p74 = scmp.ne.s32.totalorder %s66, %s68
      %p75 = scmp.eq.s32.totalorder %s23, 1
      %p76 = por %p74, %p75
      %p77 = scmp.ne.s32.totalorder %s68, %s69
      %p78 = scmp.eq.s32.totalorder %s23, 0
      %p79 = por %p77, %p78
      %p80 = scmp.ne.s32.totalorder %s68, %s69
      %p81 = scmp.eq.s32.totalorder %s24, 1
      %p82 = por %p80, %p81
      %p84 = scmp.ne.s32.totalorder %s69, %s83
      %p85 = scmp.eq.s32.totalorder %s24, 0
      %p86 = por %p84, %p85
      %s88 = sadd.s32 %s87, 1
      %p91 = scmp.eq.s32.totalorder %s18, 1
      %p92 = scmp.ne.s32.totalorder %s87, %s89
      %p93 = scmp.eq.s32.totalorder %s18, 0
      %p94 = por %p92, %p93
      %p95 = scmp.ne.s32.totalorder %s87, %s89
      %p96 = scmp.eq.s32.totalorder %s23, 1
      %p97 = por %p95, %p96
      %p98 = scmp.ne.s32.totalorder %s89, %s90
      %p99 = scmp.eq.s32.totalorder %s23, 0
      %p100 = por %p98, %p99
      %p101 = scmp.ne.s32.totalorder %s89, %s90
      %p102 = scmp.eq.s32.totalorder %s24, 1
      %p103 = por %p101, %p102
      %p105 = scmp.ne.s32.totalorder %s90, %s104
      %p106 = scmp.eq.s32.totalorder %s24, 0
      %p107 = por %p105, %p106
      %s109 = sadd.s32 %s108, 1
      %p112 = scmp.eq.s32.totalorder %s18, 1
      %p113 = scmp.ne.s32.totalorder %s108, %s110
      %p114 = scmp.eq.s32.totalorder %s18, 0
      %p115 = por %p113, %p114
      %p116 = scmp.ne.s32.totalorder %s108, %s110
      %p117 = scmp.eq.s32.totalorder %s23, 1
      %p118 = por %p116, %p117
      %p119 = scmp.ne.s32.totalorder %s110, %s111
      %p120 = scmp.eq.s32.totalorder %s23, 0
      %p121 = por %p119, %p120
      %p122 = scmp.ne.s32.totalorder %s110, %s111
      %p123 = scmp.eq.s32.totalorder %s24, 1
      %p124 = por %p122, %p123
      %p126 = scmp.ne.s32.totalorder %s111, %s125
      %p127 = scmp.eq.s32.totalorder %s24, 0
      %p128 = por %p126, %p127
      %s130 = sadd.s32 %s129, 1
      %p133 = scmp.eq.s32.totalorder %s18, 1
      %p134 = scmp.ne.s32.totalorder %s129, %s131
      %p135 = scmp.eq.s32.totalorder %s18, 0
      %p136 = por %p134, %p135
      %p137 = scmp.ne.s32.totalorder %s129, %s131
      %p138 = scmp.eq.s32.totalorder %s23, 1
      %p139 = por %p137, %p138
      %p140 = scmp.ne.s32.totalorder %s131, %s132
      %p141 = scmp.eq.s32.totalorder %s23, 0
      %p142 = por %p140, %p141
      %p143 = scmp.ne.s32.totalorder %s131, %s132
      %p144 = scmp.eq.s32.totalorder %s24, 1
      %p145 = por %p143, %p144
      %p147 = scmp.ne.s32.totalorder %s132, %s146
      %p148 = scmp.eq.s32.totalorder %s24, 0
      %p149 = por %p147, %p148
      %s150 = ssub.s32 %s25, %s37
      %s151 = ssub.s32 %s26, %s33
      %s152 = sor.u32 %s150, %s151
      %p153 = scmp.eq.s32.totalorder %s152, 0
      %s155 = sadd.s32 %s154, 1
      %s156 = scalar_select %p153, %s154, %s155
      %p159 = pneg %p153
      %p160 = scmp.eq.s32.totalorder %s18, 1
      %p161 = por %p159, %p160
      %p162 = scmp.ne.s32.totalorder %s154, %s157
      %p163 = scmp.eq.s32.totalorder %s18, 0
      %p164 = por %p162, %p163
      %p165 = scmp.ne.s32.totalorder %s154, %s157
      %p166 = scmp.eq.s32.totalorder %s23, 1
      %p167 = por %p165, %p166
      %p168 = scmp.ne.s32.totalorder %s157, %s158
      %p169 = scmp.eq.s32.totalorder %s23, 0
      %p170 = por %p168, %p169
      %p171 = scmp.ne.s32.totalorder %s157, %s158
      %p172 = scmp.eq.s32.totalorder %s24, 1
      %p173 = por %p171, %p172
      %p175 = scmp.ne.s32.totalorder %s158, %s174
      %p176 = scmp.eq.s32.totalorder %s24, 0
      %p177 = por %p175, %p176
      %p178 = scmp.le.s32.totalorder 1, %s18
      %p179 = scmp.lt.s32.totalorder %s18, 3
      %p180 = pnand %p178, %p179
      %p181 = pneg %p180
      // Predicated region
      $region9: #{tpu_custom_call.1} parent=5 // pred_check
        _
      $region10: #{tpu_custom_call.1} parent=5 // pred_check_branch
        %183 = sbr.rel (%p180) target = $region12
      $region11: #{tpu_custom_call.1} parent=5 // pred_region
        %s184 = ssub.s32 %s18, 1
        // Predicated region
        $region13: #{tpu_custom_call.1} parent=11 // pred_check
          %p185 = pneg %p79
        $region14: #{tpu_custom_call.1} parent=11 // pred_check_branch
          %187 = sbr.rel (%p185) target = $region16
        $region15: #{tpu_custom_call.1} parent=11 // pred_region
          %s189 = ssub.s32 512, 512
          %190 = vsyncadd [#allocation6], %s189
          %s191 = sshll.u32 [#allocation5], 4
          %s192 = int_to_ptr.vmem [resolvable:$true] %s191
          %197 = dma.hbm_to_vmem [thread:$0]  %s1, 512, %s192, [#allocation6], 128, 128, 8
        $region16: #{tpu_custom_call.1} parent=11 // pred_fallthru
          _
        // Predicated region
        $region17: #{tpu_custom_call.1} parent=11 // pred_check
          %p198 = pneg %p100
        $region18: #{tpu_custom_call.1} parent=11 // pred_check_branch
          %200 = sbr.rel (%p198) target = $region20
        $region19: #{tpu_custom_call.1} parent=11 // pred_region
          _
        $region20: #{tpu_custom_call.1} parent=11 // pred_fallthru
          _
        // Predicated region
        $region21: #{tpu_custom_call.1} parent=11 // pred_check
          %p201 = pneg %p121
        $region22: #{tpu_custom_call.1} parent=11 // pred_check_branch
          %203 = sbr.rel (%p201) target = $region24
        $region23: #{tpu_custom_call.1} parent=11 // pred_region
          _
        $region24: #{tpu_custom_call.1} parent=11 // pred_fallthru
          _
        // Predicated region
        $region25: #{tpu_custom_call.1} parent=11 // pred_check
          %p204 = pneg %p142
        $region26: #{tpu_custom_call.1} parent=11 // pred_check_branch
          %206 = sbr.rel (%p204) target = $region28
        $region27: #{tpu_custom_call.1} parent=11 // pred_region
          _
        $region28: #{tpu_custom_call.1} parent=11 // pred_fallthru
          _
      $region12: #{tpu_custom_call.1} parent=5 // pred_fallthru
        _
      %p207 = scmp.lt.s32.totalorder %s18, 2
      // Predicated region
      $region29: #{tpu_custom_call.1} parent=5 // pred_check
        %p208 = pneg %p207
      $region30: #{tpu_custom_call.1} parent=5 // pred_check_branch
        %210 = sbr.rel (%p208) target = $region32
      $region31: #{tpu_custom_call.1} parent=5 // pred_region
        // Predicated region
        $region33: #{tpu_custom_call.1} parent=31 // pred_check
          %p211 = pneg %p52
        $region34: #{tpu_custom_call.1} parent=31 // pred_check_branch
          %213 = sbr.rel (%p211) target = $region36
        $region35: #{tpu_custom_call.1} parent=31 // pred_region
          %s214 = sand.u32 %s42, 1
          %s215 = scalar_lea.sflag [#allocation3], %s214
          %s216 = sand.u32 %s42, 1
          %s217 = smul.addr %s216, 16
          %s218 = scalar_lea.vmem [#allocation2], %s217
          %s219 = sadd.s32 %s25, %s26
          %s220 = smul.u32 2, %s219
          %s222 = ssub.s32 256, 256
          %223 = vsyncadd %s215, %s222
          %s224 = smul.addr %s220, 128
          %s225 = scalar_lea.hbm %s0, %s224
          %s226 = sshll.u32 %s218, 4
          %s227 = int_to_ptr.vmem [resolvable:$true] %s226
          %232 = dma.hbm_to_vmem [thread:$0]  %s225, 256, %s227, %s215, 128, 128, 8
        $region36: #{tpu_custom_call.1} parent=31 // pred_fallthru
          _
      $region32: #{tpu_custom_call.1} parent=5 // pred_fallthru
        _
      %p233 = scmp.le.s32.totalorder 1, %s18
      %p234 = scmp.lt.s32.totalorder %s18, 3
      %p235 = pnand %p233, %p234
      %p236 = pneg %p235
      // Predicated region
      $region37: #{tpu_custom_call.1} parent=5 // pred_check
        _
      $region38: #{tpu_custom_call.1} parent=5 // pred_check_branch
        %238 = sbr.rel (%p235) target = $region40
      $region39: #{tpu_custom_call.1} parent=5 // pred_region
        %s239 = ssub.s32 %s18, 1
        %s240 = sand.u32 %s45, 1
        %s241 = scalar_lea.sflag [#allocation3], %s240
        %s242 = sand.u32 %s45, 1
        %s243 = smul.addr %s242, 16
        %s244 = scalar_lea.vmem [#allocation2], %s243
        // Predicated region
        $region41: #{tpu_custom_call.1} parent=39 // pred_check
          %p245 = pneg %p58
        $region42: #{tpu_custom_call.1} parent=39 // pred_check_branch
          %247 = sbr.rel (%p245) target = $region44
        $region43: #{tpu_custom_call.1} parent=39 // pred_region
          %248 = dma.done %s241, 256
        $region44: #{tpu_custom_call.1} parent=39 // pred_fallthru
          _
        // Predicated region
        $region45: #{tpu_custom_call.1} parent=39 // pred_check
          %p249 = pneg %p79
        $region46: #{tpu_custom_call.1} parent=39 // pred_check_branch
          %251 = sbr.rel (%p249) target = $region48
        $region47: #{tpu_custom_call.1} parent=39 // pred_region
          %252 = dma.done [#allocation6], 512
        $region48: #{tpu_custom_call.1} parent=39 // pred_fallthru
          _
        %s253 = sand.u32 %s45, 1
        %s254 = scalar_lea.sflag [#allocation3], %s253
        %s255 = sand.u32 %s45, 1
        %s256 = smul.addr %s255, 16
        %s257 = scalar_lea.vmem [#allocation2], %s256
        %p258 = pneg %p58
        %p259 = pneg %p55
        %p260 = pneg %p79
        %p261 = pneg %p76
        %p262 = pneg %p100
        %p263 = pneg %p97
        %p264 = pneg %p121
        %p265 = pneg %p118
        %p266 = pneg %p142
        %p267 = pneg %p139
        %p268 = pneg %p170
        %p269 = pneg %p167
        %s270 = sand.u32 %s157, 1
        %s271 = scalar_lea.sflag [#allocation4], %s270
        %s272 = sand.u32 %s157, 1
        %s273 = smul.addr %s272, 32
        %s274 = scalar_lea.vmem [#allocation7], %s273
        %s275 = sadd.s32 %s27, %s28
        %s276 = smul.u32 2, %s275
        %s277 = smul.u32 4, %s28
        %v278 = vld [vmem:[%s244] sm:$0xff]
        %v279 = vld [vmem:[%s244 + $0x8] sm:$0xff]
        %v280 = vld [vmem:[#allocation5] sm:$0xff]
        %v281 = vld [vmem:[#allocation5 + $0x8] sm:$0xff]
        %v282 = vld [vmem:[#allocation5 + $0x10] sm:$0xff]
        %v283 = vld [vmem:[#allocation5 + $0x18] sm:$0xff]
        %v284 = vld [vmem:[%s2] sm:$0x1]
        %v286 = vlaneseq
        %v287 = vshrl.u32 %v286, 7
        %v288 = vsub.s32 0, %v287
        %v289 = vrot.slane %v284, %v288
        %vm291 = vcmask 261120
        %v293 = vsel %vm291, %v278, 0
        %v296 = vsel %vm291, %v279, 0
        %298 = vmatprep.subr.mxu0 0.0
        %299 = vmatpush1.msra.mxu0 %v280
        %300 = vmatprep.subr.mxu0 0.0
        %301 = vmatpush1.msra.mxu0 %v281
        %302 = vmatprep.subr.mxu0 0.0
        %303 = vmatpush1.msra.mxu0 %v282
        %304 = vmatprep.subr.mxu0 0.0
        %305 = vmatpush1.msra.mxu0 %v283
        %306 = vmatprep.subr.mxu0 0.0
        %307 = vmatpush1.msra.mxu0 0.0
        %308 = vmatprep.subr.mxu0 0.0
        %309 = vmatpush1.msra.mxu0 0.0
        %310 = vmatprep.subr.mxu0 0.0
        %311 = vmatpush1.msra.mxu0 0.0
        %312 = vmatprep.subr.mxu0 0.0
        %313 = vmatpush1.msra.mxu0 0.0
        %314 = vmatprep.subr.mxu0 0.0
        %315 = vmatpush1.msra.mxu0 0.0
        %316 = vmatprep.subr.mxu0 0.0
        %317 = vmatpush1.msra.mxu0 0.0
        %318 = vmatprep.subr.mxu0 0.0
        %319 = vmatpush1.msra.mxu0 0.0
        %320 = vmatprep.subr.mxu0 0.0
        %321 = vmatpush1.msra.mxu0 0.0
        %322 = vmatprep.subr.mxu0 0.0
        %323 = vmatpush1.msra.mxu0 0.0
        %324 = vmatprep.subr.mxu0 0.0
        %325 = vmatpush1.msra.mxu0 0.0
        %326 = vmatprep.subr.mxu0 0.0
        %327 = vmatpush1.msra.mxu0 0.0
        %328 = vmatprep.subr.mxu0 0.0
        %329 = vmatpush1.msra.mxu0 0.0
        %330 = vmatprep.subr.mxu0 0.0
        %331 = vmatpush1.msra.mxu0 0.0
        %332 = vmatprep.subr.mxu0 0.0
        %333 = vmatpush1.msra.mxu0 0.0
        %334 = vmatprep.subr.mxu0 0.0
        %335 = vmatpush1.msra.mxu0 0.0
        %336 = vmatprep.subr.mxu0 0.0
        %337 = vmatpush1.msra.mxu0 0.0
        %338 = vmatprep.subr.mxu0 0.0
        %339 = vmatpush1.msra.mxu0 0.0
        %340 = vmatprep.subr.mxu0 0.0
        %341 = vmatpush1.msra.mxu0 0.0
        %342 = vmatprep.subr.mxu0 0.0
        %343 = vmatpush1.msra.mxu0 0.0
        %344 = vmatprep.subr.mxu0 0.0
        %345 = vmatpush1.msra.mxu0 0.0
        %346 = vmatprep.subr.mxu0 0.0
        %347 = vmatpush1.msra.mxu0 0.0
        %348 = vmatprep.subr.mxu0 0.0
        %349 = vmatpush1.msra.mxu0 0.0
        %350 = vmatprep.subr.mxu0 0.0
        %351 = vmatpush1.msra.mxu0 0.0
        %352 = vmatprep.subr.mxu0 0.0
        %353 = vmatpush1.msra.mxu0 0.0
        %354 = vmatprep.subr.mxu0 0.0
        %355 = vmatpush1.msra.mxu0 0.0
        %356 = vmatprep.subr.mxu0 0.0
        %357 = vmatpush1.msra.mxu0 0.0
        %358 = vmatprep.subr.mxu0 0.0
        %359 = vmatpush1.msra.mxu0 0.0
        %360 = vmatprep.subr.mxu0 0.0
        %361 = vmatpush1.msra.mxu0 0.0
        %362 = vmatprep.mubr.f32.mxu0 0.0
        %363 = vmatmul.mubr.f32.gmra.mrb[0].mxu0 %v293
        %v364 = vpop.f32.mrb[0].mxu0
        %v365 = vadd.f32 %v289, %v364
        %v366 = vpop.f32.mrb[0].mxu0
        %367 = vmatprep.mubr.f32.mxu0 0.0
        %368 = vmatmul.mubr.f32.gmra.mrb[0].mxu0 %v296
        %v369 = vpop.f32.mrb[0].mxu0
        %v370 = vadd.f32 %v289, %v369
        %v371 = vpop.f32.mrb[0].mxu0
        %372 = vdwg.mxu0
        %v373 = vsel %vm291, %v365, 0.0
        %374 = vadd.xlane.f32.xlu0 %v373
        %v375 = vpop.xlane.xlu0 %374
        %v376 = vsel %vm291, %v370, 0.0
        %377 = vadd.xlane.f32.xlu0 %v376
        %v378 = vpop.xlane.xlu0 %377
        %v379 = vrcp.pop 32.0
        %v380 = vmul.f32 %v375, %v379
        %v381 = vmul.f32 %v378, %v379
        %v382 = vsub.f32 %v365, %v380
        %v383 = vsub.f32 %v370, %v381
        %v384 = vmul.f32 %v382, %v382
        %v385 = vmul.f32 %v383, %v383
        %v386 = vsel %vm291, %v384, 0.0
        %387 = vadd.xlane.f32.xlu0 %v386
        %v388 = vpop.xlane.xlu0 %387
        %v389 = vsel %vm291, %v385, 0.0
        %390 = vadd.xlane.f32.xlu0 %v389
        %v391 = vpop.xlane.xlu0 %390
        %v392 = vmul.f32 %v388, %v379
        %v393 = vmul.f32 %v391, %v379
        %v394 = vadd.f32 %v392, 1e-05
        %v395 = vadd.f32 %v393, 1e-05
        %v396 = vrsqrt.pop %v394
        %v397 = vrsqrt.pop %v395
        %v398 = vmul.f32 %v382, %v396
        %v399 = vmul.f32 %v383, %v397
        %v400 = vld [vmem:[%s3] sm:$0x1]
        %v402 = vlaneseq
        %v403 = vshrl.u32 %v402, 7
        %v404 = vsub.s32 0, %v403
        %v405 = vrot.slane %v400, %v404
        %v407 = vmul.f32 %v398, %v405
        %v408 = vmul.f32 %v399, %v405
        %v409 = vld [vmem:[%s4] sm:$0x1]
        %v411 = vlaneseq
        %v412 = vshrl.u32 %v411, 7
        %v413 = vsub.s32 0, %v412
        %v414 = vrot.slane %v409, %v413
        %v416 = vadd.f32 %v407, %v414
        %v417 = vadd.f32 %v408, %v414
        %v420 = vcombine.high %v416, %v416
        %v421 = vcombine.high %v417, %v417
        %vm424 = vcmask 125952
        %425 = vst.msk [vmem:[%s274] sm:$0xf] %vm424, %v416
        %426 = vst.msk [vmem:[%s274 + $0x8] sm:$0xf] %vm424, %v420
        %427 = vst.msk [vmem:[%s274 + $0x10] sm:$0xf] %vm424, %v417
        %428 = vst.msk [vmem:[%s274 + $0x18] sm:$0xf] %vm424, %v421
        %429 = vrot.lane.b32.xlu0 %v416, 112
        %v430 = vpop.permute.xlu0 %429
        %431 = vrot.lane.b32.xlu0 %v420, 112
        %v432 = vpop.permute.xlu0 %431
        %433 = vrot.lane.b32.xlu0 %v417, 112
        %v434 = vpop.permute.xlu0 %433
        %435 = vrot.lane.b32.xlu0 %v421, 112
        %v436 = vpop.permute.xlu0 %435
        %s441 = scalar_lea.vmem %s274, 4 [#allocation7]
        %442 = vst.msk [vmem:[%s441] sm:$0xf] %vm424, %v430
        %443 = vst.msk [vmem:[%s441 + $0x8] sm:$0xf] %vm424, %v432
        %444 = vst.msk [vmem:[%s441 + $0x10] sm:$0xf] %vm424, %v434
        %445 = vst.msk [vmem:[%s441 + $0x18] sm:$0xf] %vm424, %v436
        %s446 = sand.u32 %s157, 1
        %s447 = scalar_lea.sflag [#allocation4], %s446
        %s448 = sand.u32 %s157, 1
        %s449 = smul.addr %s448, 32
        %s450 = scalar_lea.vmem [#allocation7], %s449
        // Predicated region
        $region49: #{tpu_custom_call.1} parent=39 // pred_check
          %p451 = pneg %p167
        $region50: #{tpu_custom_call.1} parent=39 // pred_check_branch
          %453 = sbr.rel (%p451) target = $region52
        $region51: #{tpu_custom_call.1} parent=39 // pred_region
          %s454 = smul.u32 4, %s28
          %s456 = ssub.s32 512, 512
          %457 = vsyncadd %s447, %s456
          %s458 = smul.addr %s454, 2
          %s459 = smul.addr %s27, 8
          %s460 = sadd.s32 %s458, %s459
          %s461 = smul.addr %s460, 64
          %s462 = scalar_lea.hbm %s5, %s461
          %s463 = sshll.u32 %s450, 4
          %s464 = int_to_ptr.vmem [resolvable:$true] %s463
          %469 = dma.vmem_to_hbm [thread:$0]  %s464, 512, %s462, %s447, 64, 64, 4
        $region52: #{tpu_custom_call.1} parent=39 // pred_fallthru
          _
      $region40: #{tpu_custom_call.1} parent=5 // pred_fallthru
        _
      %p470 = scmp.le.s32.totalorder 2, %s18
      // Predicated region
      $region53: #{tpu_custom_call.1} parent=5 // pred_check
        %p471 = pneg %p470
      $region54: #{tpu_custom_call.1} parent=5 // pred_check_branch
        %473 = sbr.rel (%p471) target = $region56
      $region55: #{tpu_custom_call.1} parent=5 // pred_region
        %s474 = ssub.s32 %s18, 2
        // Predicated region
        $region57: #{tpu_custom_call.1} parent=55 // pred_check
          %p475 = pneg %p173
        $region58: #{tpu_custom_call.1} parent=55 // pred_check_branch
          %477 = sbr.rel (%p475) target = $region60
        $region59: #{tpu_custom_call.1} parent=55 // pred_region
          %s478 = sand.u32 %s158, 1
          %s479 = scalar_lea.sflag [#allocation4], %s478
          %s480 = sand.u32 %s158, 1
          %s481 = smul.addr %s480, 32
          %s482 = scalar_lea.vmem [#allocation7], %s481
          %483 = dma.done %s479, 512
        $region60: #{tpu_custom_call.1} parent=55 // pred_fallthru
          _
      $region56: #{tpu_custom_call.1} parent=5 // pred_fallthru
        _
    $region6: #{tpu_custom_call.1} parent=1 // loop_footer
      %s22 = sadd.s32 1, %s18
    $region7: #{tpu_custom_call.1} parent=1 // loop_footer_branch
      %17 = sbr.rel target = $region3
    $region8: #{tpu_custom_call.1} parent=1 // loop_exit
      _
    %484 = vsyncpa [#allocation3], 1
    %s485 = scalar_lea.sflag [#allocation3], 1
    %486 = vsyncpa %s485, 1
    %487 = vsyncpa [#allocation6], 1
    %488 = vsyncpa [#allocation4], 1
    %s489 = scalar_lea.sflag [#allocation4], 1
    %490 = vsyncpa %s489, 1

</llo_original>
